<compile_context>
chip_gen: v7x
topology: tpu7x:2x2x1
jax: 0.10.0
libtpu: 0.0.40
codegen_flags: <defaults>
</compile_context>

<pallas_src>
import functools

import jax
import jax.numpy as jnp
from jax import lax
from jax.experimental import pallas as pl
from jax.experimental.pallas import tpu as pltpu

_LANE = 128
# Per-block byte budget for one input tile. (in + out) arrays * 2 pipeline
# buffers * 2 MiB = 8 MiB total VMEM — safe on v5e/v6e/v7x scoped defaults,
# and large enough to sit near the HBM roofline.
_TARGET_BLOCK_BYTES = 2 * 1024 * 1024
_MIN_BLOCK_BYTES = 512 * 1024


def _normalize_kernel(x_ref, o_ref, *, power):
    # x_ref / o_ref: (B_T, C, HW_T) tile; reduce over the channel axis (1).
    x = x_ref[...].astype(jnp.float32)
    if power == 2:
        ssq = jnp.sum(x * x, axis=1, keepdims=True)           # (B_T, 1, HW_T)
        out = x * lax.rsqrt(ssq)                               # EUP rsqrt, VPU mul
    else:
        p = float(power)
        if p.is_integer():
            xp = lax.integer_pow(x, int(p))                    # VPU multiplies
        else:
            xp = x ** p
        s = jnp.sum(xp, axis=1, keepdims=True)                 # (B_T, 1, HW_T)
        inv = s ** (-1.0 / p)                                  # one EUP op per column
        out = x * inv                                          # broadcast multiply
    o_ref[...] = out.astype(o_ref.dtype)


def _choose_tiles(n, c, hw_p, itemsize):
    """Pick (B_T, HW_T): ~0.5-2 MiB blocks, HW_T a 128-multiple dividing hw_p,
    and (when possible) >= 2 grid steps so both v7x TensorCores get work."""
    elem_bytes = c * hw_p * itemsize          # one (padded) batch element
    col_bytes = c * _LANE * itemsize          # one 128-lane column strip

    if elem_bytes >= _MIN_BLOCK_BYTES:
        # Large element: tile HW, one batch element per step.
        n_cols = hw_p // _LANE
        max_cols = max(1, _TARGET_BLOCK_BYTES // col_bytes)
        best = 1
        for d in range(1, n_cols + 1):
            if n_cols % d == 0 and d <= max_cols:
                best = d
        return 1, best * _LANE

    # Tiny per-element block: fold batch elements per step, keeping >= 2 grid
    # steps when N >= 2.
    max_bt = max(1, _TARGET_BLOCK_BYTES // max(elem_bytes, 1))
    best_bt = 1
    for d in range(1, n + 1):
        if n % d != 0 or d > max_bt:
            continue
        if n >= 2 and (n // d) < 2:
            continue
        best_bt = d
    return best_bt, hw_p


def normalize(x, power=2):
    """Pallas equivalent of the PyTorch `Normalize` module (reduce over dim 1)."""
    n, c, h, w = x.shape
    hw = h * w
    xr = x.reshape(n, c, hw)                                   # lane-dense last dim

    # Guarantee a 128-multiple last dim (unmasked, lane-dense stores).
    pad = (-hw) % _LANE
    hw_p = hw + pad
    if pad:
        # Pad with ones so the throwaway columns don't produce inf/NaN work.
        xr = jnp.pad(xr, ((0, 0), (0, 0), (0, pad)), constant_values=1)

    itemsize = jnp.dtype(x.dtype).itemsize
    b_t, hw_t = _choose_tiles(n, c, hw_p, itemsize)
    grid = (n // b_t, hw_p // hw_t)

    kernel = functools.partial(_normalize_kernel, power=power)
    cost = pl.CostEstimate(
        flops=3 * n * c * hw_p,
        transcendentals=n * hw_p,
        bytes_accessed=2 * n * c * hw_p * itemsize,
    )

    out = pl.pallas_call(
        kernel,
        out_shape=jax.ShapeDtypeStruct((n, c, hw_p), x.dtype),
        grid=grid,
        in_specs=[pl.BlockSpec((b_t, c, hw_t), lambda i, j: (i, 0, j))],
        out_specs=pl.BlockSpec((b_t, c, hw_t), lambda i, j: (i, 0, j)),
        compiler_params=pltpu.CompilerParams(
            dimension_semantics=("parallel", "parallel"),
        ),
        cost_estimate=cost,
    )(xr)

    if pad:
        out = out[:, :, :hw]
    return out.reshape(n, c, h, w)


if __name__ == "__main__":
    key = jax.random.PRNGKey(0)
    x = jax.random.normal(key, (2, 4, 16, 16), jnp.float32)    # NCHW like PyTorch
    fwd = jax.jit(normalize)
    out = fwd(x)
    jax.block_until_ready(out)

    # Reference check: same math as the PyTorch module (power = 2).
    ref = x / jnp.power(jnp.sum(jnp.power(x, 2), axis=1, keepdims=True), 0.5)
    assert out.shape == x.shape and out.dtype == x.dtype
    assert jnp.allclose(out, ref, rtol=1e-4, atol=1e-5)
    print("KERNEL_OK")
</pallas_src>

<mosaic_0001>
module attributes {stable_mosaic.version = 11 : i64} {
  func.func @_normalize_kernel(%arg0: i32, %arg1: i32, %arg2: memref<1x4x256xf32, #tpu.memory_space<vmem>>, %arg3: memref<1x4x256xf32, #tpu.memory_space<vmem>>) attributes {dimension_semantics = [#tpu.dimension_semantics<parallel>, #tpu.dimension_semantics<parallel>], iteration_bounds = array<i64: 2, 1>, scalar_prefetch = 0 : i64, scratch_operands = 0 : i64, tpu.core_type = #tpu.core_type<tc>, window_params = [{transform_indices = @transform_0, window_bounds = array<i64: 1, 4, 256>}, {transform_indices = @transform_1, window_bounds = array<i64: 1, 4, 256>}]} {
    %c0 = arith.constant 0 : index
    %c0_0 = arith.constant 0 : index
    %c0_1 = arith.constant 0 : index
    %0 = vector.load %arg2[%c0, %c0_0, %c0_1] : memref<1x4x256xf32, #tpu.memory_space<vmem>>, vector<1x4x256xf32>
    %1 = arith.mulf %0, %0 : vector<1x4x256xf32>
    %cst = arith.constant dense<0.000000e+00> : vector<1x256xf32>
    %2 = vector.multi_reduction <add>, %1, %cst [1] : vector<1x4x256xf32> to vector<1x256xf32>
    %3 = vector.shape_cast %2 : vector<1x256xf32> to vector<1x1x256xf32>
    %4 = math.rsqrt %3 : vector<1x1x256xf32>
    %5 = vector.broadcast %4 : vector<1x1x256xf32> to vector<1x4x256xf32>
    %6 = arith.mulf %0, %5 : vector<1x4x256xf32>
    %c0_2 = arith.constant 0 : index
    %c0_3 = arith.constant 0 : index
    %c0_4 = arith.constant 0 : index
    %7 = vector.load %arg3[%c0_2, %c0_3, %c0_4] : memref<1x4x256xf32, #tpu.memory_space<vmem>>, vector<1x4x256xf32>
    tpu.vector_store %arg3[%c0_2, %c0_3, %c0_4], %6 {strides = array<i32>} : memref<1x4x256xf32, #tpu.memory_space<vmem>>, vector<1x4x256xf32>,
    return
  }
  func.func @transform_0(%arg0: i32, %arg1: i32) -> (i32, i32, i32) {
    %c0_i32 = arith.constant 0 : i32
    %c0_i32_0 = arith.constant 0 : i32
    return %arg0, %c0_i32, %arg1 : i32, i32, i32
  }
  func.func @transform_1(%arg0: i32, %arg1: i32) -> (i32, i32, i32) {
    %c0_i32 = arith.constant 0 : i32
    %c0_i32_0 = arith.constant 0 : i32
    return %arg0, %c0_i32, %arg1 : i32, i32, i32
  }
}

</mosaic_0001>

<llo_original>
// kernel: normalize.1
$region0: #{normalize.1}
  #allocation0 [shape = 'u32[]', space=smem, size = 0x4, offset = 0x4, fixed_abs, tag = 'smem constant byte address 0x4 - core index']
  #allocation1 [shape = 'u32[144,128]{1,0:T(1,128)}', space=vmem, size = 0x12000, scoped, tag = 'internal scratch']
  %s0 = inlined_call_operand.vmem [shape: f32[2,4,256], index: 0, kind: input, shape index: {}]
  %s1 = inlined_call_operand.vmem [shape: f32[2,4,256], index: 1, kind: output, shape index: {}]
  %s2 = sld [smem:[#allocation0]]
  $region37: #{normalize.1} parent=0
    _
  %s4 = ssub.s32 1, %s2
  %s5 = scalar_select 0, %s4, %s2
  loop: start=0, step=1, limit=4
  $region2: #{normalize.1} parent=0 // loop_pre_header
    _
  $region3: #{normalize.1} parent=0 // loop_header
    %s7 = sphi 0, %s11
    %p8 = scmp.ge.s32.totalorder %s7, 4
    %s14 = sphi 0, %s26
    %s15 = sphi 0, %s22
    %s16 = sphi 0, %s14
    %s17 = sphi 0, %s15
    %s18 = sphi 0, %s16
    %s19 = sphi 0, %s17
    %s31 = sphi 0, %s33
    %s34 = sphi 0, %s31
    %s35 = sphi 0, %s34
    %s51 = sphi 0, %s35
    %s59 = sphi 0, %s61
    %s62 = sphi 0, %s59
    %s63 = sphi 0, %s62
    %s79 = sphi 0, %s63
  $region4: #{normalize.1} parent=0 // loop_header_branch
    %10 = sbr.rel (%p8) target = $region8
  $region5: #{normalize.1} parent=0 // loop_body
    %s12 = ssub.s32 %s7, 1
    %s13 = ssub.s32 %s7, 2
    %s20 = sadd.s32 1, %s15
    %p21 = scmp.ge.s32.totalorder %s20, 1
    %s22 = scalar_select %p21, 0, %s20
    %s23 = sadd.s32 1, %s14
    %s24 = scalar_select %p21, %s23, %s14
    %p25 = scmp.ge.s32.totalorder %s24, 2
    %s26 = scalar_select %p25, 0, %s24
    %s27 = ssub.s32 %s14, %s26
    %s28 = ssub.s32 %s15, %s22
    %s29 = sor.u32 %s27, %s28
    %p30 = scmp.eq.s32.totalorder %s29, 0
    %s32 = sadd.s32 %s31, 1
    %s33 = scalar_select %p30, %s31, %s32
    %p36 = pneg %p30
    %p37 = scmp.eq.s32.totalorder %s7, 1
    %p38 = por %p36, %p37
    %p39 = scmp.ne.s32.totalorder %s31, %s34
    %p40 = scmp.eq.s32.totalorder %s7, 0
    %p41 = por %p39, %p40
    %p42 = scmp.ne.s32.totalorder %s31, %s34
    %p43 = scmp.eq.s32.totalorder %s12, 1
    %p44 = por %p42, %p43
    %p45 = scmp.ne.s32.totalorder %s34, %s35
    %p46 = scmp.eq.s32.totalorder %s12, 0
    %p47 = por %p45, %p46
    %p48 = scmp.ne.s32.totalorder %s34, %s35
    %p49 = scmp.eq.s32.totalorder %s13, 1
    %p50 = por %p48, %p49
    %p52 = scmp.ne.s32.totalorder %s35, %s51
    %p53 = scmp.eq.s32.totalorder %s13, 0
    %p54 = por %p52, %p53
    %s55 = ssub.s32 %s14, %s26
    %s56 = ssub.s32 %s15, %s22
    %s57 = sor.u32 %s55, %s56
    %p58 = scmp.eq.s32.totalorder %s57, 0
    %s60 = sadd.s32 %s59, 1
    %s61 = scalar_select %p58, %s59, %s60
    %p64 = pneg %p58
    %p65 = scmp.eq.s32.totalorder %s7, 1
    %p66 = por %p64, %p65
    %p67 = scmp.ne.s32.totalorder %s59, %s62
    %p68 = scmp.eq.s32.totalorder %s7, 0
    %p69 = por %p67, %p68
    %p70 = scmp.ne.s32.totalorder %s59, %s62
    %p71 = scmp.eq.s32.totalorder %s12, 1
    %p72 = por %p70, %p71
    %p73 = scmp.ne.s32.totalorder %s62, %s63
    %p74 = scmp.eq.s32.totalorder %s12, 0
    %p75 = por %p73, %p74
    %p76 = scmp.ne.s32.totalorder %s62, %s63
    %p77 = scmp.eq.s32.totalorder %s13, 1
    %p78 = por %p76, %p77
    %p80 = scmp.ne.s32.totalorder %s63, %s79
    %p81 = scmp.eq.s32.totalorder %s13, 0
    %p82 = por %p80, %p81
    %p83 = scmp.le.s32.totalorder 1, %s7
    %p84 = scmp.lt.s32.totalorder %s7, 3
    %p85 = pnand %p83, %p84
    %p86 = pneg %p85
    // Predicated region
    $region9: #{normalize.1} parent=5 // pred_check
      _
    $region10: #{normalize.1} parent=5 // pred_check_branch
      %88 = sbr.rel (%p85) target = $region12
    $region11: #{normalize.1} parent=5 // pred_region
      %s89 = ssub.s32 %s7, 1
    $region12: #{normalize.1} parent=5 // pred_fallthru
      _
    %p90 = scmp.lt.s32.totalorder %s7, 2
    // Predicated region
    $region13: #{normalize.1} parent=5 // pred_check
      %p91 = pneg %p90
    $region14: #{normalize.1} parent=5 // pred_check_branch
      %93 = sbr.rel (%p91) target = $region16
    $region15: #{normalize.1} parent=5 // pred_region
      // Predicated region
      $region17: #{normalize.1} parent=15 // pred_check
        %p94 = pneg %p41
      $region18: #{normalize.1} parent=15 // pred_check_branch
        %96 = sbr.rel (%p94) target = $region20
      $region19: #{normalize.1} parent=15 // pred_region
        %s97 = smul.u32 2, %s15
        %p98 = scmp.lt.s32.totalorder %s14, 1
        %s99 = scalar_select %p98, %s14, 1
        %p100 = scmp.lt.s32.totalorder %s97, 1
        %s101 = scalar_select %p100, %s97, 1
        %s102 = smul.addr %s99, 2
        %s103 = sadd.s32 %s101, %s102
        %s104 = smul.addr %s103, 4
        %s105 = scalar_lea.vmem %s0, %s104
        %s106 = smul.u32 2, %s15
      $region20: #{normalize.1} parent=15 // pred_fallthru
        _
    $region16: #{normalize.1} parent=5 // pred_fallthru
      _
    %p107 = scmp.le.s32.totalorder 1, %s7
    %p108 = scmp.lt.s32.totalorder %s7, 3
    %p109 = pnand %p107, %p108
    %p110 = pneg %p109
    // Predicated region
    $region21: #{normalize.1} parent=5 // pred_check
      _
    $region22: #{normalize.1} parent=5 // pred_check_branch
      %112 = sbr.rel (%p109) target = $region24
    $region23: #{normalize.1} parent=5 // pred_region
      %s113 = ssub.s32 %s7, 1
      %s114 = smul.u32 2, %s17
      %p115 = scmp.lt.s32.totalorder %s16, 1
      %s116 = scalar_select %p115, %s16, 1
      %p117 = scmp.lt.s32.totalorder %s114, 1
      %s118 = scalar_select %p117, %s114, 1
      %s119 = smul.addr %s116, 2
      %s120 = sadd.s32 %s118, %s119
      %s121 = smul.addr %s120, 4
      %s122 = scalar_lea.vmem %s0, %s121
      %p123 = pneg %p47
      %p124 = pneg %p44
      %p125 = pneg %p75
      %p126 = pneg %p72
      %s127 = smul.u32 2, %s17
      %p128 = scmp.lt.s32.totalorder %s16, 1
      %s129 = scalar_select %p128, %s16, 1
      %p130 = scmp.lt.s32.totalorder %s127, 1
      %s131 = scalar_select %p130, %s127, 1
      %s132 = smul.addr %s129, 2
      %s133 = sadd.s32 %s131, %s132
      %s134 = smul.addr %s133, 4
      %s135 = scalar_lea.vmem %s1, %s134
      %s136 = smul.u32 2, %s17
      %p137 = scmp.lt.s32.totalorder %s16, 1
      %s138 = scalar_select %p137, %s16, 1
      %p139 = scmp.lt.s32.totalorder %s136, 1
      %s140 = scalar_select %p139, %s136, 1
      %s141 = smul.addr %s138, 2
      %s142 = sadd.s32 %s140, %s141
      %s143 = smul.addr %s142, 4
      %s144 = scalar_lea.vmem %s0, %s143
      %s145 = smul.u32 2, %s17
      %s146 = smul.u32 2, %s17
      %p147 = scmp.lt.s32.totalorder %s16, 1
      %s148 = scalar_select %p147, %s16, 1
      %p149 = scmp.lt.s32.totalorder %s146, 1
      %s150 = scalar_select %p149, %s146, 1
      %s151 = smul.addr %s148, 2
      %s152 = sadd.s32 %s150, %s151
      %s153 = smul.addr %s152, 4
      %s154 = scalar_lea.vmem %s1, %s153
      %s155 = smul.u32 2, %s17
      %v156 = vld [vmem:[%s144] sm:$0xff]
      %v157 = vmul.f32 %v156, %v156
      %v159 = vcombine.high %v157, %v157
      %vm161 = vcmask 1043456
      %v162 = vsel %vm161, %v157, 0.0
      %v163 = vrot.slane %v162, 4
      %v164 = vadd.f32 %v162, %v163
      %v165 = vrot.slane %v164, 2
      %v166 = vadd.f32 %v164, %v165
      %v167 = vrot.slane %v166, 1
      %v168 = vadd.f32 %v166, %v167
      %v169 = vsel %vm161, %v159, 0.0
      %v170 = vrot.slane %v169, 4
      %v171 = vadd.f32 %v169, %v170
      %v172 = vrot.slane %v171, 2
      %v173 = vadd.f32 %v171, %v172
      %v174 = vrot.slane %v173, 1
      %v175 = vadd.f32 %v173, %v174
      %v176 = vrsqrt.pop %v168
      %v177 = vrsqrt.pop %v175
      %v180 = vcombine.low %v176, %v177
      %v182 = vmul.f32 %v156, %v180
      %183 = vst [vmem:[%s154] sm:$0xff] %v182
      %s184 = smul.u32 2, %s17
      %p185 = scmp.lt.s32.totalorder %s16, 1
      %s186 = scalar_select %p185, %s16, 1
      %p187 = scmp.lt.s32.totalorder %s184, 1
      %s188 = scalar_select %p187, %s184, 1
      %s189 = smul.addr %s186, 2
      %s190 = sadd.s32 %s188, %s189
      %s191 = smul.addr %s190, 4
      %s192 = scalar_lea.vmem %s1, %s191
      // Predicated region
      $region25: #{normalize.1} parent=23 // pred_check
        %p193 = pneg %p72
      $region26: #{normalize.1} parent=23 // pred_check_branch
        %195 = sbr.rel (%p193) target = $region28
      $region27: #{normalize.1} parent=23 // pred_region
        %s196 = smul.u32 2, %s17
      $region28: #{normalize.1} parent=23 // pred_fallthru
        _
    $region24: #{normalize.1} parent=5 // pred_fallthru
      _
    %p197 = scmp.le.s32.totalorder 2, %s7
    // Predicated region
    $region29: #{normalize.1} parent=5 // pred_check
      %p198 = pneg %p197
    $region30: #{normalize.1} parent=5 // pred_check_branch
      %200 = sbr.rel (%p198) target = $region32
    $region31: #{normalize.1} parent=5 // pred_region
      %s201 = ssub.s32 %s7, 2
      // Predicated region
      $region33: #{normalize.1} parent=31 // pred_check
        %p202 = pneg %p78
      $region34: #{normalize.1} parent=31 // pred_check_branch
        %204 = sbr.rel (%p202) target = $region36
      $region35: #{normalize.1} parent=31 // pred_region
        %s205 = smul.u32 2, %s19
        %p206 = scmp.lt.s32.totalorder %s18, 1
        %s207 = scalar_select %p206, %s18, 1
        %p208 = scmp.lt.s32.totalorder %s205, 1
        %s209 = scalar_select %p208, %s205, 1
        %s210 = smul.addr %s207, 2
        %s211 = sadd.s32 %s209, %s210
        %s212 = smul.addr %s211, 4
        %s213 = scalar_lea.vmem %s1, %s212
      $region36: #{normalize.1} parent=31 // pred_fallthru
        _
    $region32: #{normalize.1} parent=5 // pred_fallthru
      _
  $region6: #{normalize.1} parent=0 // loop_footer
    %s11 = sadd.s32 1, %s7
  $region7: #{normalize.1} parent=0 // loop_footer_branch
    %6 = sbr.rel target = $region3
  $region8: #{normalize.1} parent=0 // loop_exit
    _

</llo_original>
